<compile_context>
chip_gen: v7x
topology: tpu7x:2x2x1
jax: 0.10.0
libtpu: 0.0.40
codegen_flags: <defaults>
</compile_context>

<pallas_src>
import functools

import jax
import jax.numpy as jnp
from jax import lax
from jax.experimental import pallas as pl
from jax.experimental.pallas import tpu as pltpu

_HALO = 8  # sublane-aligned halo rows fetched on each side of the main input block


def _round_up(x, m):
    return (x + m - 1) // m * m


def _tl_cap_for_vmem(s0, c_in, c_out, vmem_budget_bytes):
    # rough per-tile VMEM bytes per output row:
    #   double-buffered bf16 input (2*2*s0*C_in) + f32 staging window (4*s0*C_in)
    #   + output / h1 / conv intermediates (~8 * 4 * C_out)
    per_row = s0 * c_in * (2 * 2 + 4) + c_out * 4 * 8
    cap = vmem_budget_bytes // max(per_row, 1)
    return max(128, (cap // 128) * 128)


def _pick_tl(l1, cap):
    """Multiple-of-128 tile dividing L1 when tiling is needed, else one tile."""
    if l1 > cap:
        d = (cap // 128) * 128
        while d >= 128:
            if l1 % d == 0:
                return d
            d -= 128
    return _round_up(l1, 8)


def _make_kernel(*, s0, tl, g, c_in, c_out, l1):
    def kernel(xm_ref, xl_ref, xr_ref, w1e_ref, b1_ref, w2_ref, b2e_ref,
               out_ref, xwin_ref):
        t = pl.program_id(1)

        # ---- stage the per-tile input window (f32) into VMEM scratch --------
        # xwin row r  <->  conv-padded input coordinate (g*t + r - _HALO)
        xwin_ref[0:_HALO, :] = xl_ref[0].astype(jnp.float32)
        xwin_ref[_HALO:_HALO + g, :] = xm_ref[0].astype(jnp.float32)
        xwin_ref[_HALO + g:_HALO + g + _HALO, :] = xr_ref[0].astype(jnp.float32)

        # ---- conv1 (k=3, stride=s0) fused with the 1x1 shortcut conv --------
        # one widened matmul per tap: (TL+2, C_in) @ (C_in, 2*C_out)
        s = None
        for k in range(3):
            tap = xwin_ref[pl.ds(_HALO - s0 + k, tl + 2, stride=s0), :]
            d = jnp.dot(tap, w1e_ref[k], preferred_element_type=jnp.float32)
            s = d if s is None else s + d                       # (TL+2, 2*C_out)

        pre1 = s[:, :c_out] + b1_ref[...]                       # conv1 pre-act
        sxtra = s[:, c_out:]                                    # shortcut pre-act

        h1 = jnp.maximum(pre1, 0.0)
        # Zero any row whose *global* h1 index is outside [0, L1): this is
        # conv2's zero padding at both sequence ends and also masks the halo /
        # tail rows that were recomputed from clamped or zero-padded input.
        jj = lax.broadcasted_iota(jnp.int32, (tl + 2, c_out), 0)
        gidx = t * tl + jj - 1
        h1 = jnp.where((gidx >= 0) & (gidx < l1), h1, 0.0)      # (TL+2, C_out) f32

        # ---- conv2 (k=3, stride=1, pad=1) + residual + relu -----------------
        out2 = (jnp.dot(h1[0:tl].astype(jnp.bfloat16), w2_ref[0],
                        preferred_element_type=jnp.float32)
                + jnp.dot(h1[1:tl + 1].astype(jnp.bfloat16), w2_ref[1],
                          preferred_element_type=jnp.float32)
                + jnp.dot(h1[2:tl + 2].astype(jnp.bfloat16), w2_ref[2],
                          preferred_element_type=jnp.float32))
        res = jnp.maximum(out2 + sxtra[1:tl + 1] + b2e_ref[...], 0.0)  # (TL, C_out)

        # Lane-dense store: emit a (C_out, TL) tile, i.e. directly NCL layout.
        out_ref[0] = jnp.transpose(res, (1, 0)).astype(out_ref.dtype)

    return kernel


@functools.partial(jax.jit,
                   static_argnames=("stride", "tl_cap", "vmem_budget_bytes"))
def resnet1d_down_block(x, w1, b1, w2, b2, we, be, *, stride,
                        tl_cap=512, vmem_budget_bytes=8 * 1024 * 1024):
    """x: (N, C_in, L) NCL (PyTorch convention). Returns (N, C_out, L_out) NCL."""
    s0, s1 = stride
    assert s1 == 1, "stride[1] must be 1 for the residual add to be shape-valid"
    assert 1 <= s0 <= _HALO

    n, c_in, l = x.shape
    c_out = w1.shape[0]
    l1 = (l - 1) // s0 + 1                        # conv1 / shortcut output length

    cap = min(tl_cap, _tl_cap_for_vmem(s0, c_in, c_out, vmem_budget_bytes))
    tl = _pick_tl(l1, cap)                        # output rows per length-tile
    t_tiles = pl.cdiv(l1, tl)                     # number of length tiles
    g = s0 * tl                                   # padded-input rows per main block
    lp = g * t_tiles + _HALO                      # zero-extended padded length

    # --- glue: NCL -> NLC, bf16, zero-pad (one fused XLA copy of the input).
    # TODO(synk): accept NLC / bf16 input directly to remove this last glue pass.
    x_nlc = jnp.transpose(x, (0, 2, 1)).astype(jnp.bfloat16)
    x_pad = jnp.pad(x_nlc, ((0, 0), (1, lp - l - 1), (0, 0)))   # conv pad + tail

    # --- weights: per-tap (C_in, C_out); fuse the 1x1 shortcut into tap k=1
    w1_t = jnp.transpose(w1, (2, 1, 0))                          # (3, C_in, C_out)
    we_t = jnp.transpose(we[:, :, 0], (1, 0))                    # (C_in, C_out)
    zero = jnp.zeros_like(we_t)
    w1e = jnp.stack([jnp.concatenate([w1_t[0], zero], axis=1),
                     jnp.concatenate([w1_t[1], we_t], axis=1),
                     jnp.concatenate([w1_t[2], zero], axis=1)],
                    axis=0).astype(jnp.bfloat16)                 # (3, C_in, 2*C_out)
    w2_t = jnp.transpose(w2, (2, 1, 0)).astype(jnp.bfloat16)     # (3, C_out, C_out)
    b1_r = b1.reshape(1, c_out).astype(jnp.float32)
    b2e = (b2 + be).reshape(1, c_out).astype(jnp.float32)        # conv2 + shortcut bias

    kernel = _make_kernel(s0=s0, tl=tl, g=g, c_in=c_in, c_out=c_out, l1=l1)
    hr = _HALO

    out = pl.pallas_call(
        kernel,
        out_shape=jax.ShapeDtypeStruct((n, c_out, t_tiles * tl), jnp.float32),
        grid=(n, t_tiles),
        in_specs=[
            # main input tile (auto-pipelined, ~1x HBM traffic)
            pl.BlockSpec((1, g, c_in), lambda i, j: (i, j, 0)),
            # 8-row left / right halo blocks of the *same* array (tiny extra traffic)
            pl.BlockSpec((1, hr, c_in),
                         lambda i, j: (i, jnp.maximum(j * (g // hr) - 1, 0), 0)),
            pl.BlockSpec((1, hr, c_in),
                         lambda i, j: (i, (j + 1) * (g // hr), 0)),
            pl.BlockSpec((3, c_in, 2 * c_out), lambda i, j: (0, 0, 0)),
            pl.BlockSpec((1, c_out), lambda i, j: (0, 0)),
            pl.BlockSpec((3, c_out, c_out), lambda i, j: (0, 0, 0)),
            pl.BlockSpec((1, c_out), lambda i, j: (0, 0)),
        ],
        out_specs=pl.BlockSpec((1, c_out, tl), lambda i, j: (i, 0, j)),
        scratch_shapes=[pltpu.VMEM((g + 2 * hr, c_in), jnp.float32)],
        compiler_params=pltpu.CompilerParams(
            dimension_semantics=("parallel", "parallel"),
            vmem_limit_bytes=32 * 1024 * 1024,   # within scoped limits on v5e/v6e/v7x
        ),
    )(x_pad, x_pad, x_pad, w1e, b1_r, w2_t, b2e)

    if t_tiles * tl != l1:                        # drop padded tail columns, if any
        out = out[:, :, :l1]
    return out


def _reference(x, w1, b1, w2, b2, we, be, stride):
    """Pure-JAX reference matching the PyTorch forward (batchnorm=0, dropout=0)."""
    s0, s1 = stride
    dn = ("NCH", "OIH", "NCH")

    def conv1d(inp, w, b, s, pad):
        y = lax.conv_general_dilated(inp, w, window_strides=(s,),
                                     padding=[(pad, pad)], dimension_numbers=dn)
        return y + b[None, :, None]

    extra = conv1d(x, we, be, s0, 0)
    h = jax.nn.relu(conv1d(x, w1, b1, s0, 1))
    o = conv1d(h, w2, b2, s1, 1)
    return jax.nn.relu(extra + o)


def _run_case(key, n, c_in, c_out, l, stride, **kw):
    ks = jax.random.split(key, 7)
    x = jax.random.normal(ks[0], (n, c_in, l), dtype=jnp.float32)
    w1 = jax.random.normal(ks[1], (c_out, c_in, 3), dtype=jnp.float32) * 0.2
    b1 = jax.random.normal(ks[2], (c_out,), dtype=jnp.float32) * 0.1
    w2 = jax.random.normal(ks[3], (c_out, c_out, 3), dtype=jnp.float32) * 0.2
    b2 = jax.random.normal(ks[4], (c_out,), dtype=jnp.float32) * 0.1
    we = jax.random.normal(ks[5], (c_out, c_in, 1), dtype=jnp.float32) * 0.2
    be = jax.random.normal(ks[6], (c_out,), dtype=jnp.float32) * 0.1

    y = resnet1d_down_block(x, w1, b1, w2, b2, we, be, stride=stride, **kw)
    y = jax.block_until_ready(y)

    # Reference at the kernel's working precision (inputs/weights bf16-rounded,
    # f32 math) -- isolates kernel math; tolerance covers in-kernel bf16 h1.
    q = lambda a: a.astype(jnp.bfloat16).astype(jnp.float32)
    y_ref = _reference(q(x), q(w1), b1, q(w2), b2, q(we), be, stride)

    l1 = (l - 1) // stride[0] + 1
    assert y.shape == y_ref.shape == (n, c_out, l1), (y.shape, y_ref.shape)
    assert jnp.allclose(y, y_ref, atol=1e-2, rtol=1e-2), \
        float(jnp.max(jnp.abs(y - y_ref)))


if __name__ == "__main__":
    # TODO(synk): batchnorm=1 / dropout=1 branches (BatchNorm1d train-mode stats,
    # Dropout2d RNG masking) are not implemented; defaults (0, 0) are reproduced.
    key = jax.random.PRNGKey(0)
    k1, k2 = jax.random.split(key)

    # Small shape implied by the module: batch=2, C_in=4, C_out=8, L=16 (1 L-tile).
    _run_case(k1, n=2, c_in=4, c_out=8, l=16, stride=(2, 1))
    # Longer sequence exercising the multi-tile (halo recompute) path: 2 L-tiles.
    _run_case(k2, n=2, c_in=4, c_out=8, l=512, stride=(2, 1), tl_cap=128)

    print("KERNEL_OK")
</pallas_src>

<mosaic_0001>
module attributes {stable_mosaic.version = 11 : i64} {
  func.func @kernel(%arg0: i32, %arg1: i32, %arg2: memref<1x16x4xbf16, #tpu.memory_space<vmem>>, %arg3: memref<1x8x4xbf16, #tpu.memory_space<vmem>>, %arg4: memref<1x8x4xbf16, #tpu.memory_space<vmem>>, %arg5: memref<3x4x16xbf16, #tpu.memory_space<vmem>>, %arg6: memref<1x8xf32, #tpu.memory_space<vmem>>, %arg7: memref<3x8x8xbf16, #tpu.memory_space<vmem>>, %arg8: memref<1x8xf32, #tpu.memory_space<vmem>>, %arg9: memref<1x8x8xf32, #tpu.memory_space<vmem>>, %arg10: memref<32x4xf32, #tpu.memory_space<vmem>>) attributes {dimension_semantics = [#tpu.dimension_semantics<parallel>, #tpu.dimension_semantics<parallel>], iteration_bounds = array<i64: 2, 1>, scalar_prefetch = 0 : i64, scratch_operands = 1 : i64, tpu.core_type = #tpu.core_type<tc>, window_params = [{transform_indices = @transform_0, window_bounds = array<i64: 1, 16, 4>}, {transform_indices = @transform_1, window_bounds = array<i64: 1, 8, 4>}, {transform_indices = @transform_2, window_bounds = array<i64: 1, 8, 4>}, {pipeline_mode = #tpu.pipeline_mode<synchronous>, transform_indices = @transform_3, window_bounds = array<i64: 3, 4, 16>}, {pipeline_mode = #tpu.pipeline_mode<synchronous>, transform_indices = @transform_4, window_bounds = array<i64: 1, 8>}, {pipeline_mode = #tpu.pipeline_mode<synchronous>, transform_indices = @transform_5, window_bounds = array<i64: 3, 8, 8>}, {pipeline_mode = #tpu.pipeline_mode<synchronous>, transform_indices = @transform_6, window_bounds = array<i64: 1, 8>}, {transform_indices = @transform_7, window_bounds = array<i64: 1, 8, 8>}]} {
    %c0 = arith.constant 0 : index
    %c0_0 = arith.constant 0 : index
    %c0_1 = arith.constant 0 : index
    %0 = vector.load %arg3[%c0, %c0_0, %c0_1] : memref<1x8x4xbf16, #tpu.memory_space<vmem>>, vector<1x8x4xbf16>
    %1 = vector.shape_cast %0 : vector<1x8x4xbf16> to vector<8x4xbf16>
    %2 = arith.extf %1 : vector<8x4xbf16> to vector<8x4xf32>
    %c0_2 = arith.constant 0 : index
    %c0_3 = arith.constant 0 : index
    %3 = vector.load %arg10[%c0_2, %c0_3] : memref<32x4xf32, #tpu.memory_space<vmem>>, vector<8x4xf32>
    tpu.vector_store %arg10[%c0_2, %c0_3], %2 {strides = array<i32>} : memref<32x4xf32, #tpu.memory_space<vmem>>, vector<8x4xf32>,
    %c0_4 = arith.constant 0 : index
    %c0_5 = arith.constant 0 : index
    %c0_6 = arith.constant 0 : index
    %4 = vector.load %arg2[%c0_4, %c0_5, %c0_6] : memref<1x16x4xbf16, #tpu.memory_space<vmem>>, vector<1x16x4xbf16>
    %5 = vector.shape_cast %4 : vector<1x16x4xbf16> to vector<16x4xbf16>
    %6 = arith.extf %5 : vector<16x4xbf16> to vector<16x4xf32>
    %c8 = arith.constant 8 : index
    %c0_7 = arith.constant 0 : index
    %7 = vector.load %arg10[%c8, %c0_7] : memref<32x4xf32, #tpu.memory_space<vmem>>, vector<16x4xf32>
    tpu.vector_store %arg10[%c8, %c0_7], %6 {strides = array<i32>} : memref<32x4xf32, #tpu.memory_space<vmem>>, vector<16x4xf32>,
    %c0_8 = arith.constant 0 : index
    %c0_9 = arith.constant 0 : index
    %c0_10 = arith.constant 0 : index
    %8 = vector.load %arg4[%c0_8, %c0_9, %c0_10] : memref<1x8x4xbf16, #tpu.memory_space<vmem>>, vector<1x8x4xbf16>
    %9 = vector.shape_cast %8 : vector<1x8x4xbf16> to vector<8x4xbf16>
    %10 = arith.extf %9 : vector<8x4xbf16> to vector<8x4xf32>
    %c24 = arith.constant 24 : index
    %c0_11 = arith.constant 0 : index
    %11 = vector.load %arg10[%c24, %c0_11] : memref<32x4xf32, #tpu.memory_space<vmem>>, vector<8x4xf32>
    tpu.vector_store %arg10[%c24, %c0_11], %10 {strides = array<i32>} : memref<32x4xf32, #tpu.memory_space<vmem>>, vector<8x4xf32>,
    %c6 = arith.constant 6 : index
    %c0_12 = arith.constant 0 : index
    %12 = tpu.strided_load %arg10[%c6, %c0_12] {strides = array<i32: 2, 1>} : memref<32x4xf32, #tpu.memory_space<vmem>>, vector<10x4xf32>
    %c0_13 = arith.constant 0 : index
    %c0_14 = arith.constant 0 : index
    %c0_15 = arith.constant 0 : index
    %13 = vector.load %arg5[%c0_13, %c0_14, %c0_15] : memref<3x4x16xbf16, #tpu.memory_space<vmem>>, vector<1x4x16xbf16>
    %14 = vector.shape_cast %13 : vector<1x4x16xbf16> to vector<4x16xbf16>
    %cst = arith.constant dense<0.000000e+00> : vector<10x16xf32>
    %15 = tpu.matmul %12, %14, %cst {dimension_numbers = #tpu.dot_dimension_numbers<[1], [0], [0], [1], [0, 0, 1, 1], [], []>} : vector<10x4xf32>, vector<4x16xbf16>, vector<10x16xf32> -> vector<10x16xf32>
    %c7 = arith.constant 7 : index
    %c0_16 = arith.constant 0 : index
    %16 = tpu.strided_load %arg10[%c7, %c0_16] {strides = array<i32: 2, 1>} : memref<32x4xf32, #tpu.memory_space<vmem>>, vector<10x4xf32>
    %c1 = arith.constant 1 : index
    %c0_17 = arith.constant 0 : index
    %c0_18 = arith.constant 0 : index
    %17 = vector.load %arg5[%c1, %c0_17, %c0_18] : memref<3x4x16xbf16, #tpu.memory_space<vmem>>, vector<1x4x16xbf16>
    %18 = vector.shape_cast %17 : vector<1x4x16xbf16> to vector<4x16xbf16>
    %cst_19 = arith.constant dense<0.000000e+00> : vector<10x16xf32>
    %19 = tpu.matmul %16, %18, %cst_19 {dimension_numbers = #tpu.dot_dimension_numbers<[1], [0], [0], [1], [0, 0, 1, 1], [], []>} : vector<10x4xf32>, vector<4x16xbf16>, vector<10x16xf32> -> vector<10x16xf32>
    %20 = arith.addf %15, %19 : vector<10x16xf32>
    %c8_20 = arith.constant 8 : index
    %c0_21 = arith.constant 0 : index
    %21 = tpu.strided_load %arg10[%c8_20, %c0_21] {strides = array<i32: 2, 1>} : memref<32x4xf32, #tpu.memory_space<vmem>>, vector<10x4xf32>
    %c2 = arith.constant 2 : index
    %c0_22 = arith.constant 0 : index
    %c0_23 = arith.constant 0 : index
    %22 = vector.load %arg5[%c2, %c0_22, %c0_23] : memref<3x4x16xbf16, #tpu.memory_space<vmem>>, vector<1x4x16xbf16>
    %23 = vector.shape_cast %22 : vector<1x4x16xbf16> to vector<4x16xbf16>
    %cst_24 = arith.constant dense<0.000000e+00> : vector<10x16xf32>
    %24 = tpu.matmul %21, %23, %cst_24 {dimension_numbers = #tpu.dot_dimension_numbers<[1], [0], [0], [1], [0, 0, 1, 1], [], []>} : vector<10x4xf32>, vector<4x16xbf16>, vector<10x16xf32> -> vector<10x16xf32>
    %25 = arith.addf %20, %24 : vector<10x16xf32>
    %26 = vector.extract_strided_slice %25 {offsets = [0, 0], sizes = [10, 8], strides = [1, 1]} : vector<10x16xf32> to vector<10x8xf32>
    %c0_25 = arith.constant 0 : index
    %c0_26 = arith.constant 0 : index
    %27 = vector.load %arg6[%c0_25, %c0_26] : memref<1x8xf32, #tpu.memory_space<vmem>>, vector<1x8xf32>
    %28 = vector.broadcast %27 : vector<1x8xf32> to vector<10x8xf32>
    %29 = arith.addf %26, %28 : vector<10x8xf32>
    %30 = vector.extract_strided_slice %25 {offsets = [0, 8], sizes = [10, 8], strides = [1, 1]} : vector<10x16xf32> to vector<10x8xf32>
    %cst_27 = arith.constant 0.000000e+00 : f32
    %31 = vector.broadcast %cst_27 : f32 to vector<10x8xf32>
    %32 = arith.maximumf %29, %31 : vector<10x8xf32>
    %33 = tpu.iota {dimensions = array<i32: 0>} : vector<10x8xi32>
    %c8_i32 = arith.constant 8 : i32
    %34 = arith.muli %arg1, %c8_i32 : i32
    %35 = vector.broadcast %34 : i32 to vector<10x8xi32>
    %36 = arith.addi %35, %33 : vector<10x8xi32>
    %c1_i32 = arith.constant 1 : i32
    %37 = vector.broadcast %c1_i32 : i32 to vector<10x8xi32>
    %38 = arith.subi %36, %37 : vector<10x8xi32>
    %c0_i32 = arith.constant 0 : i32
    %39 = vector.broadcast %c0_i32 : i32 to vector<10x8xi32>
    %40 = arith.cmpi sge, %38, %39 : vector<10x8xi32>
    %c8_i32_28 = arith.constant 8 : i32
    %41 = vector.broadcast %c8_i32_28 : i32 to vector<10x8xi32>
    %42 = arith.cmpi slt, %38, %41 : vector<10x8xi32>
    %43 = arith.andi %40, %42 : vector<10x8xi1>
    %cst_29 = arith.constant 0.000000e+00 : f32
    %44 = vector.broadcast %cst_29 : f32 to vector<10x8xf32>
    %45 = arith.select %43, %32, %44 : vector<10x8xi1>, vector<10x8xf32>
    %46 = vector.extract_strided_slice %45 {offsets = [0, 0], sizes = [8, 8], strides = [1, 1]} : vector<10x8xf32> to vector<8x8xf32>
    %47 = arith.truncf %46 : vector<8x8xf32> to vector<8x8xbf16>
    %c0_30 = arith.constant 0 : index
    %c0_31 = arith.constant 0 : index
    %c0_32 = arith.constant 0 : index
    %48 = vector.load %arg7[%c0_30, %c0_31, %c0_32] : memref<3x8x8xbf16, #tpu.memory_space<vmem>>, vector<1x8x8xbf16>
    %49 = vector.shape_cast %48 : vector<1x8x8xbf16> to vector<8x8xbf16>
    %cst_33 = arith.constant dense<0.000000e+00> : vector<8x8xf32>
    %50 = tpu.matmul %47, %49, %cst_33 {dimension_numbers = #tpu.dot_dimension_numbers<[1], [0], [0], [1], [0, 0, 1, 1], [], []>} : vector<8x8xbf16>, vector<8x8xbf16>, vector<8x8xf32> -> vector<8x8xf32>
    %51 = vector.extract_strided_slice %45 {offsets = [1, 0], sizes = [8, 8], strides = [1, 1]} : vector<10x8xf32> to vector<8x8xf32>
    %52 = arith.truncf %51 : vector<8x8xf32> to vector<8x8xbf16>
    %c1_34 = arith.constant 1 : index
    %c0_35 = arith.constant 0 : index
    %c0_36 = arith.constant 0 : index
    %53 = vector.load %arg7[%c1_34, %c0_35, %c0_36] : memref<3x8x8xbf16, #tpu.memory_space<vmem>>, vector<1x8x8xbf16>
    %54 = vector.shape_cast %53 : vector<1x8x8xbf16> to vector<8x8xbf16>
    %cst_37 = arith.constant dense<0.000000e+00> : vector<8x8xf32>
    %55 = tpu.matmul %52, %54, %cst_37 {dimension_numbers = #tpu.dot_dimension_numbers<[1], [0], [0], [1], [0, 0, 1, 1], [], []>} : vector<8x8xbf16>, vector<8x8xbf16>, vector<8x8xf32> -> vector<8x8xf32>
    %56 = arith.addf %50, %55 : vector<8x8xf32>
    %57 = vector.extract_strided_slice %45 {offsets = [2, 0], sizes = [8, 8], strides = [1, 1]} : vector<10x8xf32> to vector<8x8xf32>
    %58 = arith.truncf %57 : vector<8x8xf32> to vector<8x8xbf16>
    %c2_38 = arith.constant 2 : index
    %c0_39 = arith.constant 0 : index
    %c0_40 = arith.constant 0 : index
    %59 = vector.load %arg7[%c2_38, %c0_39, %c0_40] : memref<3x8x8xbf16, #tpu.memory_space<vmem>>, vector<1x8x8xbf16>
    %60 = vector.shape_cast %59 : vector<1x8x8xbf16> to vector<8x8xbf16>
    %cst_41 = arith.constant dense<0.000000e+00> : vector<8x8xf32>
    %61 = tpu.matmul %58, %60, %cst_41 {dimension_numbers = #tpu.dot_dimension_numbers<[1], [0], [0], [1], [0, 0, 1, 1], [], []>} : vector<8x8xbf16>, vector<8x8xbf16>, vector<8x8xf32> -> vector<8x8xf32>
    %62 = arith.addf %56, %61 : vector<8x8xf32>
    %63 = vector.extract_strided_slice %30 {offsets = [1, 0], sizes = [8, 8], strides = [1, 1]} : vector<10x8xf32> to vector<8x8xf32>
    %64 = arith.addf %62, %63 : vector<8x8xf32>
    %c0_42 = arith.constant 0 : index
    %c0_43 = arith.constant 0 : index
    %65 = vector.load %arg8[%c0_42, %c0_43] : memref<1x8xf32, #tpu.memory_space<vmem>>, vector<1x8xf32>
    %66 = vector.broadcast %65 : vector<1x8xf32> to vector<8x8xf32>
    %67 = arith.addf %64, %66 : vector<8x8xf32>
    %cst_44 = arith.constant 0.000000e+00 : f32
    %68 = vector.broadcast %cst_44 : f32 to vector<8x8xf32>
    %69 = arith.maximumf %67, %68 : vector<8x8xf32>
    %70 = tpu.transpose %69, [1, 0] : vector<8x8xf32> -> vector<8x8xf32>
    %c0_45 = arith.constant 0 : index
    %c0_46 = arith.constant 0 : index
    %c0_47 = arith.constant 0 : index
    %71 = vector.load %arg9[%c0_45, %c0_46, %c0_47] : memref<1x8x8xf32, #tpu.memory_space<vmem>>, vector<1x8x8xf32>
    %72 = vector.shape_cast %71 : vector<1x8x8xf32> to vector<8x8xf32>
    %73 = vector.shape_cast %70 : vector<8x8xf32> to vector<1x8x8xf32>
    tpu.vector_store %arg9[%c0_45, %c0_46, %c0_47], %73 {strides = array<i32>} : memref<1x8x8xf32, #tpu.memory_space<vmem>>, vector<1x8x8xf32>,
    return
  }
  func.func @transform_0(%arg0: i32, %arg1: i32) -> (i32, i32, i32) {
    %c0_i32 = arith.constant 0 : i32
    %c0_i32_0 = arith.constant 0 : i32
    return %arg0, %arg1, %c0_i32 : i32, i32, i32
  }
  func.func @transform_1(%arg0: i32, %arg1: i32) -> (i32, i32, i32) {
    %c2_i32 = arith.constant 2 : i32
    %0 = arith.muli %arg1, %c2_i32 : i32
    %c1_i32 = arith.constant 1 : i32
    %1 = arith.subi %0, %c1_i32 : i32
    %c0_i32 = arith.constant 0 : i32
    %2 = arith.maxsi %1, %c0_i32 : i32
    %c0_i32_0 = arith.constant 0 : i32
    %c0_i32_1 = arith.constant 0 : i32
    return %arg0, %2, %c0_i32_0 : i32, i32, i32
  }
  func.func @transform_2(%arg0: i32, %arg1: i32) -> (i32, i32, i32) {
    %c1_i32 = arith.constant 1 : i32
    %0 = arith.addi %arg1, %c1_i32 : i32
    %c2_i32 = arith.constant 2 : i32
    %1 = arith.muli %0, %c2_i32 : i32
    %c0_i32 = arith.constant 0 : i32
    %c0_i32_0 = arith.constant 0 : i32
    return %arg0, %1, %c0_i32 : i32, i32, i32
  }
  func.func @transform_3(%arg0: i32, %arg1: i32) -> (i32, i32, i32) {
    %c0_i32 = arith.constant 0 : i32
    %c0_i32_0 = arith.constant 0 : i32
    %c0_i32_1 = arith.constant 0 : i32
    %c0_i32_2 = arith.constant 0 : i32
    return %c0_i32, %c0_i32_0, %c0_i32_1 : i32, i32, i32
  }
  func.func @transform_4(%arg0: i32, %arg1: i32) -> (i32, i32) {
    %c0_i32 = arith.constant 0 : i32
    %c0_i32_0 = arith.constant 0 : i32
    %c0_i32_1 = arith.constant 0 : i32
    return %c0_i32, %c0_i32_0 : i32, i32
  }
  func.func @transform_5(%arg0: i32, %arg1: i32) -> (i32, i32, i32) {
    %c0_i32 = arith.constant 0 : i32
    %c0_i32_0 = arith.constant 0 : i32
    %c0_i32_1 = arith.constant 0 : i32
    %c0_i32_2 = arith.constant 0 : i32
    return %c0_i32, %c0_i32_0, %c0_i32_1 : i32, i32, i32
  }
  func.func @transform_6(%arg0: i32, %arg1: i32) -> (i32, i32) {
    %c0_i32 = arith.constant 0 : i32
    %c0_i32_0 = arith.constant 0 : i32
    %c0_i32_1 = arith.constant 0 : i32
    return %c0_i32, %c0_i32_0 : i32, i32
  }
  func.func @transform_7(%arg0: i32, %arg1: i32) -> (i32, i32, i32) {
    %c0_i32 = arith.constant 0 : i32
    %c0_i32_0 = arith.constant 0 : i32
    return %arg0, %c0_i32, %arg1 : i32, i32, i32
  }
}

</mosaic_0001>

<llo_original>
// kernel: resnet1d_down_block.1
$region0: #{resnet1d_down_block.1}
  #allocation0 [shape = 'u32[]', space=smem, size = 0x4, offset = 0x4, fixed_abs, tag = 'smem constant byte address 0x4 - core index']
  #allocation1 [shape = 'u32[144,128]{1,0:T(1,128)}', space=vmem, size = 0x12000, scoped, tag = 'internal scratch']
  #allocation2 [shape = 'f32[32,4]{1,0:T(8,128)}', space=vmem, size = 0x4000, scoped, tag = 'scratch operand']
  %s0 = inlined_call_operand.vmem [shape: bf16[2,24,4], index: 0, kind: input, shape index: {}, may-alias: {0,1,2}]
  %s1 = inlined_call_operand.vmem [shape: bf16[2,24,4], index: 1, kind: input, shape index: {}, may-alias: {0,1,2}]
  %s2 = inlined_call_operand.vmem [shape: bf16[2,24,4], index: 2, kind: input, shape index: {}, may-alias: {0,1,2}]
  %s3 = inlined_call_operand.vmem [shape: bf16[3,4,16], index: 3, kind: input, shape index: {}]
  %s4 = inlined_call_operand.vmem [shape: f32[1,8], index: 4, kind: input, shape index: {}]
  %s5 = inlined_call_operand.vmem [shape: bf16[3,8,8], index: 5, kind: input, shape index: {}]
  %s6 = inlined_call_operand.vmem [shape: f32[1,8], index: 6, kind: input, shape index: {}]
  %s7 = inlined_call_operand.hbm [shape: f32[2,8,8], index: 7, kind: output, shape index: {}]
  %s8 = sld [smem:[#allocation0]]
  $region61: #{resnet1d_down_block.1} parent=0
    _
  %s10 = ssub.s32 1, %s8
  %s11 = scalar_select 0, %s10, %s8
  $region1: #{resnet1d_down_block.1} parent=0
    #allocation3 [shape = 'u8[8192]{0}', space=vmem, size = 0x2000, scoped, tag = 'output window, operand 0']
    #allocation4 [shape = 's32[2]{0}', space=sflag, size = 0x8, scoped, tag = 'scoped memory for resnet1d_down_block.1']
    %12 = vsyncpa [#allocation4], 0
    %s13 = scalar_lea.sflag [#allocation4], 1
    %14 = vsyncpa %s13, 0
    loop: start=0, step=1, limit=4
    $region2: #{resnet1d_down_block.1} parent=1 // loop_pre_header
      _
    $region3: #{resnet1d_down_block.1} parent=1 // loop_header
      %s16 = sphi 0, %s20
      %p17 = scmp.ge.s32.totalorder %s16, 4
      %s23 = sphi 0, %s35
      %s24 = sphi 0, %s31
      %s25 = sphi 0, %s23
      %s26 = sphi 0, %s24
      %s27 = sphi 0, %s25
      %s28 = sphi 0, %s26
      %s40 = sphi 0, %s42
      %s43 = sphi 0, %s40
      %s44 = sphi 0, %s43
      %s60 = sphi 0, %s44
      %s76 = sphi 0, %s78
      %s79 = sphi 0, %s76
      %s80 = sphi 0, %s79
      %s96 = sphi 0, %s80
      %s108 = sphi 0, %s110
      %s111 = sphi 0, %s108
      %s112 = sphi 0, %s111
      %s128 = sphi 0, %s112
      %s132 = sphi 0, %s132
      %s134 = sphi 0, %s132
      %s135 = sphi 0, %s134
      %s149 = sphi 0, %s135
      %s153 = sphi 0, %s153
      %s155 = sphi 0, %s153
      %s156 = sphi 0, %s155
      %s170 = sphi 0, %s156
      %s174 = sphi 0, %s174
      %s176 = sphi 0, %s174
      %s177 = sphi 0, %s176
      %s191 = sphi 0, %s177
      %s195 = sphi 0, %s195
      %s197 = sphi 0, %s195
      %s198 = sphi 0, %s197
      %s212 = sphi 0, %s198
      %s220 = sphi 0, %s222
      %s223 = sphi 0, %s220
      %s224 = sphi 0, %s223
      %s240 = sphi 0, %s224
    $region4: #{resnet1d_down_block.1} parent=1 // loop_header_branch
      %19 = sbr.rel (%p17) target = $region8
    $region5: #{resnet1d_down_block.1} parent=1 // loop_body
      %s21 = ssub.s32 %s16, 1
      %s22 = ssub.s32 %s16, 2
      %s29 = sadd.s32 1, %s24
      %p30 = scmp.ge.s32.totalorder %s29, 1
      %s31 = scalar_select %p30, 0, %s29
      %s32 = sadd.s32 1, %s23
      %s33 = scalar_select %p30, %s32, %s23
      %p34 = scmp.ge.s32.totalorder %s33, 2
      %s35 = scalar_select %p34, 0, %s33
      %s36 = ssub.s32 %s23, %s35
      %s37 = ssub.s32 %s24, %s31
      %s38 = sor.u32 %s36, %s37
      %p39 = scmp.eq.s32.totalorder %s38, 0
      %s41 = sadd.s32 %s40, 1
      %s42 = scalar_select %p39, %s40, %s41
      %p45 = pneg %p39
      %p46 = scmp.eq.s32.totalorder %s16, 1
      %p47 = por %p45, %p46
      %p48 = scmp.ne.s32.totalorder %s40, %s43
      %p49 = scmp.eq.s32.totalorder %s16, 0
      %p50 = por %p48, %p49
      %p51 = scmp.ne.s32.totalorder %s40, %s43
      %p52 = scmp.eq.s32.totalorder %s21, 1
      %p53 = por %p51, %p52
      %p54 = scmp.ne.s32.totalorder %s43, %s44
      %p55 = scmp.eq.s32.totalorder %s21, 0
      %p56 = por %p54, %p55
      %p57 = scmp.ne.s32.totalorder %s43, %s44
      %p58 = scmp.eq.s32.totalorder %s22, 1
      %p59 = por %p57, %p58
      %p61 = scmp.ne.s32.totalorder %s44, %s60
      %p62 = scmp.eq.s32.totalorder %s22, 0
      %p63 = por %p61, %p62
      %s64 = smul.u32 %s24, 2
      %s65 = ssub.s32 %s64, 1
      %p66 = scmp.gt.s32.totalorder %s65, 0
      %s67 = scalar_select %p66, %s65, 0
      %s68 = smul.u32 %s31, 2
      %s69 = ssub.s32 %s68, 1
      %p70 = scmp.gt.s32.totalorder %s69, 0
      %s71 = scalar_select %p70, %s69, 0
      %s72 = ssub.s32 %s23, %s35
      %s73 = ssub.s32 %s67, %s71
      %s74 = sor.u32 %s72, %s73
      %p75 = scmp.eq.s32.totalorder %s74, 0
      %s77 = sadd.s32 %s76, 1
      %s78 = scalar_select %p75, %s76, %s77
      %p81 = pneg %p75
      %p82 = scmp.eq.s32.totalorder %s16, 1
      %p83 = por %p81, %p82
      %p84 = scmp.ne.s32.totalorder %s76, %s79
      %p85 = scmp.eq.s32.totalorder %s16, 0
      %p86 = por %p84, %p85
      %p87 = scmp.ne.s32.totalorder %s76, %s79
      %p88 = scmp.eq.s32.totalorder %s21, 1
      %p89 = por %p87, %p88
      %p90 = scmp.ne.s32.totalorder %s79, %s80
      %p91 = scmp.eq.s32.totalorder %s21, 0
      %p92 = por %p90, %p91
      %p93 = scmp.ne.s32.totalorder %s79, %s80
      %p94 = scmp.eq.s32.totalorder %s22, 1
      %p95 = por %p93, %p94
      %p97 = scmp.ne.s32.totalorder %s80, %s96
      %p98 = scmp.eq.s32.totalorder %s22, 0
      %p99 = por %p97, %p98
      %s100 = sadd.s32 %s24, 1
      %s101 = smul.u32 %s100, 2
      %s102 = sadd.s32 %s31, 1
      %s103 = smul.u32 %s102, 2
      %s104 = ssub.s32 %s23, %s35
      %s105 = ssub.s32 %s101, %s103
      %s106 = sor.u32 %s104, %s105
      %p107 = scmp.eq.s32.totalorder %s106, 0
      %s109 = sadd.s32 %s108, 1
      %s110 = scalar_select %p107, %s108, %s109
      %p113 = pneg %p107
      %p114 = scmp.eq.s32.totalorder %s16, 1
      %p115 = por %p113, %p114
      %p116 = scmp.ne.s32.totalorder %s108, %s111
      %p117 = scmp.eq.s32.totalorder %s16, 0
      %p118 = por %p116, %p117
      %p119 = scmp.ne.s32.totalorder %s108, %s111
      %p120 = scmp.eq.s32.totalorder %s21, 1
      %p121 = por %p119, %p120
      %p122 = scmp.ne.s32.totalorder %s111, %s112
      %p123 = scmp.eq.s32.totalorder %s21, 0
      %p124 = por %p122, %p123
      %p125 = scmp.ne.s32.totalorder %s111, %s112
      %p126 = scmp.eq.s32.totalorder %s22, 1
      %p127 = por %p125, %p126
      %p129 = scmp.ne.s32.totalorder %s112, %s128
      %p130 = scmp.eq.s32.totalorder %s22, 0
      %p131 = por %p129, %p130
      %s133 = sadd.s32 %s132, 1
      %p136 = scmp.eq.s32.totalorder %s16, 1
      %p137 = scmp.ne.s32.totalorder %s132, %s134
      %p138 = scmp.eq.s32.totalorder %s16, 0
      %p139 = por %p137, %p138
      %p140 = scmp.ne.s32.totalorder %s132, %s134
      %p141 = scmp.eq.s32.totalorder %s21, 1
      %p142 = por %p140, %p141
      %p143 = scmp.ne.s32.totalorder %s134, %s135
      %p144 = scmp.eq.s32.totalorder %s21, 0
      %p145 = por %p143, %p144
      %p146 = scmp.ne.s32.totalorder %s134, %s135
      %p147 = scmp.eq.s32.totalorder %s22, 1
      %p148 = por %p146, %p147
      %p150 = scmp.ne.s32.totalorder %s135, %s149
      %p151 = scmp.eq.s32.totalorder %s22, 0
      %p152 = por %p150, %p151
      %s154 = sadd.s32 %s153, 1
      %p157 = scmp.eq.s32.totalorder %s16, 1
      %p158 = scmp.ne.s32.totalorder %s153, %s155
      %p159 = scmp.eq.s32.totalorder %s16, 0
      %p160 = por %p158, %p159
      %p161 = scmp.ne.s32.totalorder %s153, %s155
      %p162 = scmp.eq.s32.totalorder %s21, 1
      %p163 = por %p161, %p162
      %p164 = scmp.ne.s32.totalorder %s155, %s156
      %p165 = scmp.eq.s32.totalorder %s21, 0
      %p166 = por %p164, %p165
      %p167 = scmp.ne.s32.totalorder %s155, %s156
      %p168 = scmp.eq.s32.totalorder %s22, 1
      %p169 = por %p167, %p168
      %p171 = scmp.ne.s32.totalorder %s156, %s170
      %p172 = scmp.eq.s32.totalorder %s22, 0
      %p173 = por %p171, %p172
      %s175 = sadd.s32 %s174, 1
      %p178 = scmp.eq.s32.totalorder %s16, 1
      %p179 = scmp.ne.s32.totalorder %s174, %s176
      %p180 = scmp.eq.s32.totalorder %s16, 0
      %p181 = por %p179, %p180
      %p182 = scmp.ne.s32.totalorder %s174, %s176
      %p183 = scmp.eq.s32.totalorder %s21, 1
      %p184 = por %p182, %p183
      %p185 = scmp.ne.s32.totalorder %s176, %s177
      %p186 = scmp.eq.s32.totalorder %s21, 0
      %p187 = por %p185, %p186
      %p188 = scmp.ne.s32.totalorder %s176, %s177
      %p189 = scmp.eq.s32.totalorder %s22, 1
      %p190 = por %p188, %p189
      %p192 = scmp.ne.s32.totalorder %s177, %s191
      %p193 = scmp.eq.s32.totalorder %s22, 0
      %p194 = por %p192, %p193
      %s196 = sadd.s32 %s195, 1
      %p199 = scmp.eq.s32.totalorder %s16, 1
      %p200 = scmp.ne.s32.totalorder %s195, %s197
      %p201 = scmp.eq.s32.totalorder %s16, 0
      %p202 = por %p200, %p201
      %p203 = scmp.ne.s32.totalorder %s195, %s197
      %p204 = scmp.eq.s32.totalorder %s21, 1
      %p205 = por %p203, %p204
      %p206 = scmp.ne.s32.totalorder %s197, %s198
      %p207 = scmp.eq.s32.totalorder %s21, 0
      %p208 = por %p206, %p207
      %p209 = scmp.ne.s32.totalorder %s197, %s198
      %p210 = scmp.eq.s32.totalorder %s22, 1
      %p211 = por %p209, %p210
      %p213 = scmp.ne.s32.totalorder %s198, %s212
      %p214 = scmp.eq.s32.totalorder %s22, 0
      %p215 = por %p213, %p214
      %s216 = ssub.s32 %s23, %s35
      %s217 = ssub.s32 %s24, %s31
      %s218 = sor.u32 %s216, %s217
      %p219 = scmp.eq.s32.totalorder %s218, 0
      %s221 = sadd.s32 %s220, 1
      %s222 = scalar_select %p219, %s220, %s221
      %p225 = pneg %p219
      %p226 = scmp.eq.s32.totalorder %s16, 1
      %p227 = por %p225, %p226
      %p228 = scmp.ne.s32.totalorder %s220, %s223
      %p229 = scmp.eq.s32.totalorder %s16, 0
      %p230 = por %p228, %p229
      %p231 = scmp.ne.s32.totalorder %s220, %s223
      %p232 = scmp.eq.s32.totalorder %s21, 1
      %p233 = por %p231, %p232
      %p234 = scmp.ne.s32.totalorder %s223, %s224
      %p235 = scmp.eq.s32.totalorder %s21, 0
      %p236 = por %p234, %p235
      %p237 = scmp.ne.s32.totalorder %s223, %s224
      %p238 = scmp.eq.s32.totalorder %s22, 1
      %p239 = por %p237, %p238
      %p241 = scmp.ne.s32.totalorder %s224, %s240
      %p242 = scmp.eq.s32.totalorder %s22, 0
      %p243 = por %p241, %p242
      %p244 = scmp.le.s32.totalorder 1, %s16
      %p245 = scmp.lt.s32.totalorder %s16, 3
      %p246 = pnand %p244, %p245
      %p247 = pneg %p246
      // Predicated region
      $region9: #{resnet1d_down_block.1} parent=5 // pred_check
        _
      $region10: #{resnet1d_down_block.1} parent=5 // pred_check_branch
        %249 = sbr.rel (%p246) target = $region12
      $region11: #{resnet1d_down_block.1} parent=5 // pred_region
        %s250 = ssub.s32 %s16, 1
        // Predicated region
        $region13: #{resnet1d_down_block.1} parent=11 // pred_check
          %p251 = pneg %p145
        $region14: #{resnet1d_down_block.1} parent=11 // pred_check_branch
          %253 = sbr.rel (%p251) target = $region16
        $region15: #{resnet1d_down_block.1} parent=11 // pred_region
          _
        $region16: #{resnet1d_down_block.1} parent=11 // pred_fallthru
          _
        // Predicated region
        $region17: #{resnet1d_down_block.1} parent=11 // pred_check
          %p254 = pneg %p166
        $region18: #{resnet1d_down_block.1} parent=11 // pred_check_branch
          %256 = sbr.rel (%p254) target = $region20
        $region19: #{resnet1d_down_block.1} parent=11 // pred_region
          _
        $region20: #{resnet1d_down_block.1} parent=11 // pred_fallthru
          _
        // Predicated region
        $region21: #{resnet1d_down_block.1} parent=11 // pred_check
          %p257 = pneg %p187
        $region22: #{resnet1d_down_block.1} parent=11 // pred_check_branch
          %259 = sbr.rel (%p257) target = $region24
        $region23: #{resnet1d_down_block.1} parent=11 // pred_region
          _
        $region24: #{resnet1d_down_block.1} parent=11 // pred_fallthru
          _
        // Predicated region
        $region25: #{resnet1d_down_block.1} parent=11 // pred_check
          %p260 = pneg %p208
        $region26: #{resnet1d_down_block.1} parent=11 // pred_check_branch
          %262 = sbr.rel (%p260) target = $region28
        $region27: #{resnet1d_down_block.1} parent=11 // pred_region
          _
        $region28: #{resnet1d_down_block.1} parent=11 // pred_fallthru
          _
      $region12: #{resnet1d_down_block.1} parent=5 // pred_fallthru
        _
      %p263 = scmp.lt.s32.totalorder %s16, 2
      // Predicated region
      $region29: #{resnet1d_down_block.1} parent=5 // pred_check
        %p264 = pneg %p263
      $region30: #{resnet1d_down_block.1} parent=5 // pred_check_branch
        %266 = sbr.rel (%p264) target = $region32
      $region31: #{resnet1d_down_block.1} parent=5 // pred_region
        // Predicated region
        $region33: #{resnet1d_down_block.1} parent=31 // pred_check
          %p267 = pneg %p50
        $region34: #{resnet1d_down_block.1} parent=31 // pred_check_branch
          %269 = sbr.rel (%p267) target = $region36
        $region35: #{resnet1d_down_block.1} parent=31 // pred_region
          %s270 = smul.u32 2, %s24
          %s271 = ssub.s32 3, %s270
          %p272 = scmp.lt.s32.totalorder %s271, 2
          %s273 = scalar_select %p272, %s271, 2
          %s274 = smul.u32 64, %s273
          %p275 = scmp.lt.s32.totalorder %s23, 1
          %s276 = scalar_select %p275, %s23, 1
          %p277 = scmp.lt.s32.totalorder %s270, 2
          %s278 = scalar_select %p277, %s270, 2
          %s279 = smul.addr %s276, 3
          %s280 = sadd.s32 %s278, %s279
          %s281 = smul.addr %s280, 4
          %s282 = scalar_lea.vmem %s0, %s281
          %s283 = smul.u32 2, %s24
          %s284 = ssub.s32 3, %s283
          %p285 = scmp.lt.s32.totalorder %s284, 2
          %s286 = scalar_select %p285, %s284, 2
          %s287 = smul.u32 64, %s286
        $region36: #{resnet1d_down_block.1} parent=31 // pred_fallthru
          _
        // Predicated region
        $region37: #{resnet1d_down_block.1} parent=31 // pred_check
          %p288 = pneg %p86
        $region38: #{resnet1d_down_block.1} parent=31 // pred_check_branch
          %290 = sbr.rel (%p288) target = $region40
        $region39: #{resnet1d_down_block.1} parent=31 // pred_region
          %s291 = smul.u32 %s24, 2
          %s292 = ssub.s32 %s291, 1
          %p293 = scmp.gt.s32.totalorder %s292, 0
          %s294 = scalar_select %p293, %s292, 0
          %p295 = scmp.lt.s32.totalorder %s23, 1
          %s296 = scalar_select %p295, %s23, 1
          %p297 = scmp.lt.s32.totalorder %s294, 2
          %s298 = scalar_select %p297, %s294, 2
          %s299 = smul.addr %s296, 3
          %s300 = sadd.s32 %s298, %s299
          %s301 = smul.addr %s300, 4
          %s302 = scalar_lea.vmem %s1, %s301
          %s303 = smul.u32 %s24, 2
          %s304 = ssub.s32 %s303, 1
          %p305 = scmp.gt.s32.totalorder %s304, 0
          %s306 = scalar_select %p305, %s304, 0
        $region40: #{resnet1d_down_block.1} parent=31 // pred_fallthru
          _
        // Predicated region
        $region41: #{resnet1d_down_block.1} parent=31 // pred_check
          %p307 = pneg %p118
        $region42: #{resnet1d_down_block.1} parent=31 // pred_check_branch
          %309 = sbr.rel (%p307) target = $region44
        $region43: #{resnet1d_down_block.1} parent=31 // pred_region
          %s310 = sadd.s32 %s24, 1
          %s311 = smul.u32 %s310, 2
          %p312 = scmp.lt.s32.totalorder %s23, 1
          %s313 = scalar_select %p312, %s23, 1
          %p314 = scmp.lt.s32.totalorder %s311, 2
          %s315 = scalar_select %p314, %s311, 2
          %s316 = smul.addr %s313, 3
          %s317 = sadd.s32 %s315, %s316
          %s318 = smul.addr %s317, 4
          %s319 = scalar_lea.vmem %s2, %s318
          %s320 = sadd.s32 %s24, 1
          %s321 = smul.u32 %s320, 2
        $region44: #{resnet1d_down_block.1} parent=31 // pred_fallthru
          _
      $region32: #{resnet1d_down_block.1} parent=5 // pred_fallthru
        _
      %p322 = scmp.le.s32.totalorder 1, %s16
      %p323 = scmp.lt.s32.totalorder %s16, 3
      %p324 = pnand %p322, %p323
      %p325 = pneg %p324
      // Predicated region
      $region45: #{resnet1d_down_block.1} parent=5 // pred_check
        _
      $region46: #{resnet1d_down_block.1} parent=5 // pred_check_branch
        %327 = sbr.rel (%p324) target = $region48
      $region47: #{resnet1d_down_block.1} parent=5 // pred_region
        %s328 = ssub.s32 %s16, 1
        %s329 = smul.u32 2, %s26
        %s330 = ssub.s32 3, %s329
        %p331 = scmp.lt.s32.totalorder %s330, 2
        %s332 = scalar_select %p331, %s330, 2
        %s333 = smul.u32 64, %s332
        %p334 = scmp.lt.s32.totalorder %s25, 1
        %s335 = scalar_select %p334, %s25, 1
        %p336 = scmp.lt.s32.totalorder %s329, 2
        %s337 = scalar_select %p336, %s329, 2
        %s338 = smul.addr %s335, 3
        %s339 = sadd.s32 %s337, %s338
        %s340 = smul.addr %s339, 4
        %s341 = scalar_lea.vmem %s0, %s340
        %p342 = pneg %p56
        %p343 = pneg %p53
        %s344 = smul.u32 %s26, 2
        %s345 = ssub.s32 %s344, 1
        %p346 = scmp.gt.s32.totalorder %s345, 0
        %s347 = scalar_select %p346, %s345, 0
        %p348 = scmp.lt.s32.totalorder %s25, 1
        %s349 = scalar_select %p348, %s25, 1
        %p350 = scmp.lt.s32.totalorder %s347, 2
        %s351 = scalar_select %p350, %s347, 2
        %s352 = smul.addr %s349, 3
        %s353 = sadd.s32 %s351, %s352
        %s354 = smul.addr %s353, 4
        %s355 = scalar_lea.vmem %s1, %s354
        %p356 = pneg %p92
        %p357 = pneg %p89
        %s358 = sadd.s32 %s26, 1
        %s359 = smul.u32 %s358, 2
        %p360 = scmp.lt.s32.totalorder %s25, 1
        %s361 = scalar_select %p360, %s25, 1
        %p362 = scmp.lt.s32.totalorder %s359, 2
        %s363 = scalar_select %p362, %s359, 2
        %s364 = smul.addr %s361, 3
        %s365 = sadd.s32 %s363, %s364
        %s366 = smul.addr %s365, 4
        %s367 = scalar_lea.vmem %s2, %s366
        %p368 = pneg %p124
        %p369 = pneg %p121
        %p370 = pneg %p145
        %p371 = pneg %p142
        %p372 = pneg %p166
        %p373 = pneg %p163
        %p374 = pneg %p187
        %p375 = pneg %p184
        %p376 = pneg %p208
        %p377 = pneg %p205
        %p378 = pneg %p236
        %p379 = pneg %p233
        %s380 = sand.u32 %s223, 1
        %s381 = scalar_lea.sflag [#allocation4], %s380
        %s382 = sand.u32 %s223, 1
        %s383 = smul.addr %s382, 8
        %s384 = scalar_lea.vmem [#allocation3], %s383
        %s385 = smul.u32 2, %s26
        %s386 = ssub.s32 3, %s385
        %p387 = scmp.lt.s32.totalorder %s386, 2
        %s388 = scalar_select %p387, %s386, 2
        %s389 = smul.u32 64, %s388
        %p390 = scmp.lt.s32.totalorder %s25, 1
        %s391 = scalar_select %p390, %s25, 1
        %p392 = scmp.lt.s32.totalorder %s385, 2
        %s393 = scalar_select %p392, %s385, 2
        %s394 = smul.addr %s391, 3
        %s395 = sadd.s32 %s393, %s394
        %s396 = smul.addr %s395, 4
        %s397 = scalar_lea.vmem %s0, %s396
        %s398 = smul.u32 2, %s26
        %s399 = ssub.s32 3, %s398
        %p400 = scmp.lt.s32.totalorder %s399, 2
        %s401 = scalar_select %p400, %s399, 2
        %s402 = smul.u32 64, %s401
        %s403 = smul.u32 %s26, 2
        %s404 = ssub.s32 %s403, 1
        %p405 = scmp.gt.s32.totalorder %s404, 0
        %s406 = scalar_select %p405, %s404, 0
        %p407 = scmp.lt.s32.totalorder %s25, 1
        %s408 = scalar_select %p407, %s25, 1
        %p409 = scmp.lt.s32.totalorder %s406, 2
        %s410 = scalar_select %p409, %s406, 2
        %s411 = smul.addr %s408, 3
        %s412 = sadd.s32 %s410, %s411
        %s413 = smul.addr %s412, 4
        %s414 = scalar_lea.vmem %s1, %s413
        %s415 = smul.u32 %s26, 2
        %s416 = ssub.s32 %s415, 1
        %p417 = scmp.gt.s32.totalorder %s416, 0
        %s418 = scalar_select %p417, %s416, 0
        %s419 = sadd.s32 %s26, 1
        %s420 = smul.u32 %s419, 2
        %p421 = scmp.lt.s32.totalorder %s25, 1
        %s422 = scalar_select %p421, %s25, 1
        %p423 = scmp.lt.s32.totalorder %s420, 2
        %s424 = scalar_select %p423, %s420, 2
        %s425 = smul.addr %s422, 3
        %s426 = sadd.s32 %s424, %s425
        %s427 = smul.addr %s426, 4
        %s428 = scalar_lea.vmem %s2, %s427
        %s429 = sadd.s32 %s26, 1
        %s430 = smul.u32 %s429, 2
        %v432 = vld [vmem:[%s414] sm:$0xf]
        %v433 = vunpack.c.l.bf16 %v432
        %vm434 = vcmask 31744
        %435 = vst.msk [vmem:[#allocation2] sm:$0xff] %vm434, %v433
        %v436 = vld [vmem:[%s397] sm:$0xf]
        %v437 = vld [vmem:[%s397 + $0x4] sm:$0xf]
        %v438 = vunpack.c.l.bf16 %v436
        %v439 = vunpack.c.l.bf16 %v437
        %440 = vst.msk [vmem:[#allocation2 + $0x8] sm:$0xff] %vm434, %v438
        %441 = vst.msk [vmem:[#allocation2 + $0x10] sm:$0xff] %vm434, %v439
        %v442 = vld [vmem:[%s428] sm:$0xf]
        %v443 = vunpack.c.l.bf16 %v442
        %444 = vst.msk [vmem:[#allocation2 + $0x18] sm:$0xff] %vm434, %v443
        %s445 = scalar_lea.vmem [#allocation2], 6
        %v446 = vld [vmem:[%s445] ss:$2 sm:$0xff]
        %s447 = scalar_lea.vmem [#allocation2], 22
        %v448 = vld [vmem:[%s447] ss:$2 sm:$0x3]
        %v449 = vld [vmem:[%s3] sm:$0x3]
        %s450 = scalar_lea.vmem [#allocation2], 7
        %v451 = vld [vmem:[%s450] ss:$2 sm:$0xff]
        %s452 = scalar_lea.vmem [#allocation2], 23
        %v453 = vld [vmem:[%s452] ss:$2 sm:$0x3]
        %s454 = scalar_lea.vmem %s3, 2
        %v455 = vld [vmem:[%s454] sm:$0x3]
        %v457 = vsel %vm434, %v451, 0
        %v460 = vsel %vm434, %v453, 0
        %vm462 = vcmask 1041408
        %v464 = vsel %vm462, %v455, 0
        %466 = vmatprep.subr.bf16.mxu0 0
        %467 = vmatpush1.bf16.msra.mxu0 %v464
        %468 = vmatprep.subr.bf16.mxu0 0
        %469 = vmatpush1.bf16.msra.mxu0 0
        %470 = vmatprep.subr.bf16.mxu0 0
        %471 = vmatpush1.bf16.msra.mxu0 0
        %472 = vmatprep.subr.bf16.mxu0 0
        %473 = vmatpush1.bf16.msra.mxu0 0
        %474 = vmatprep.subr.bf16.mxu0 0
        %475 = vmatpush1.bf16.msra.mxu0 0
        %476 = vmatprep.subr.bf16.mxu0 0
        %477 = vmatpush1.bf16.msra.mxu0 0
        %478 = vmatprep.subr.bf16.mxu0 0
        %479 = vmatpush1.bf16.msra.mxu0 0
        %480 = vmatprep.subr.bf16.mxu0 0
        %481 = vmatpush1.bf16.msra.mxu0 0
        %482 = vmatprep.subr.bf16.mxu0 0
        %483 = vmatpush1.bf16.msra.mxu0 0
        %484 = vmatprep.subr.bf16.mxu0 0
        %485 = vmatpush1.bf16.msra.mxu0 0
        %486 = vmatprep.subr.bf16.mxu0 0
        %487 = vmatpush1.bf16.msra.mxu0 0
        %488 = vmatprep.subr.bf16.mxu0 0
        %489 = vmatpush1.bf16.msra.mxu0 0
        %490 = vmatprep.subr.bf16.mxu0 0
        %491 = vmatpush1.bf16.msra.mxu0 0
        %492 = vmatprep.subr.bf16.mxu0 0
        %493 = vmatpush1.bf16.msra.mxu0 0
        %494 = vmatprep.subr.bf16.mxu0 0
        %495 = vmatpush1.bf16.msra.mxu0 0
        %496 = vmatprep.subr.bf16.mxu0 0
        %497 = vmatpush1.bf16.msra.mxu0 0
        %498 = vmatprep.mubr.f32.mxu0 0.0
        %499 = vmatmul.mubr.f32.gmra.mrb[0].mxu0 %v457
        %v500 = vpop.f32.mrb[0].mxu0
        %v501 = vadd.f32 0.0, %v500
        %v502 = vpop.f32.mrb[0].mxu0
        %503 = vmatprep.mubr.f32.mxu0 0.0
        %504 = vmatmul.mubr.f32.gmra.mrb[0].mxu0 %v460
        %v505 = vpop.f32.mrb[0].mxu0
        %v506 = vadd.f32 0.0, %v505
        %v507 = vpop.f32.mrb[0].mxu0
        %508 = vdwg.mxu0
        %v510 = vsel %vm434, %v446, 0
        %v513 = vsel %vm434, %v448, 0
        %v516 = vsel %vm462, %v449, 0
        %518 = vmatprep.subr.bf16.mxu0 0
        %519 = vmatpush1.bf16.msra.mxu0 %v516
        %520 = vmatprep.subr.bf16.mxu0 0
        %521 = vmatpush1.bf16.msra.mxu0 0
        %522 = vmatprep.subr.bf16.mxu0 0
        %523 = vmatpush1.bf16.msra.mxu0 0
        %524 = vmatprep.subr.bf16.mxu0 0
        %525 = vmatpush1.bf16.msra.mxu0 0
        %526 = vmatprep.subr.bf16.mxu0 0
        %527 = vmatpush1.bf16.msra.mxu0 0
        %528 = vmatprep.subr.bf16.mxu0 0
        %529 = vmatpush1.bf16.msra.mxu0 0
        %530 = vmatprep.subr.bf16.mxu0 0
        %531 = vmatpush1.bf16.msra.mxu0 0
        %532 = vmatprep.subr.bf16.mxu0 0
        %533 = vmatpush1.bf16.msra.mxu0 0
        %534 = vmatprep.subr.bf16.mxu0 0
        %535 = vmatpush1.bf16.msra.mxu0 0
        %536 = vmatprep.subr.bf16.mxu0 0
        %537 = vmatpush1.bf16.msra.mxu0 0
        %538 = vmatprep.subr.bf16.mxu0 0
        %539 = vmatpush1.bf16.msra.mxu0 0
        %540 = vmatprep.subr.bf16.mxu0 0
        %541 = vmatpush1.bf16.msra.mxu0 0
        %542 = vmatprep.subr.bf16.mxu0 0
        %543 = vmatpush1.bf16.msra.mxu0 0
        %544 = vmatprep.subr.bf16.mxu0 0
        %545 = vmatpush1.bf16.msra.mxu0 0
        %546 = vmatprep.subr.bf16.mxu0 0
        %547 = vmatpush1.bf16.msra.mxu0 0
        %548 = vmatprep.subr.bf16.mxu0 0
        %549 = vmatpush1.bf16.msra.mxu0 0
        %550 = vmatprep.mubr.f32.mxu0 0.0
        %551 = vmatmul.mubr.f32.gmra.mrb[0].mxu0 %v510
        %v552 = vpop.f32.mrb[0].mxu0
        %v553 = vadd.f32 %v501, %v552
        %v554 = vpop.f32.mrb[0].mxu0
        %555 = vmatprep.mubr.f32.mxu0 0.0
        %556 = vmatmul.mubr.f32.gmra.mrb[0].mxu0 %v513
        %v557 = vpop.f32.mrb[0].mxu0
        %v558 = vadd.f32 %v506, %v557
        %v559 = vpop.f32.mrb[0].mxu0
        %560 = vdwg.mxu0
        %s561 = scalar_lea.vmem [#allocation2], 8
        %v562 = vld [vmem:[%s561] ss:$2 sm:$0xff]
        %s563 = scalar_lea.vmem [#allocation2], 24
        %v564 = vld [vmem:[%s563] ss:$2 sm:$0x3]
        %s565 = scalar_lea.vmem %s3, 4
        %v566 = vld [vmem:[%s565] sm:$0x3]
        %v568 = vsel %vm434, %v562, 0
        %v571 = vsel %vm434, %v564, 0
        %v574 = vsel %vm462, %v566, 0
        %576 = vmatprep.subr.bf16.mxu0 0
        %577 = vmatpush1.bf16.msra.mxu0 %v574
        %578 = vmatprep.subr.bf16.mxu0 0
        %579 = vmatpush1.bf16.msra.mxu0 0
        %580 = vmatprep.subr.bf16.mxu0 0
        %581 = vmatpush1.bf16.msra.mxu0 0
        %582 = vmatprep.subr.bf16.mxu0 0
        %583 = vmatpush1.bf16.msra.mxu0 0
        %584 = vmatprep.subr.bf16.mxu0 0
        %585 = vmatpush1.bf16.msra.mxu0 0
        %586 = vmatprep.subr.bf16.mxu0 0
        %587 = vmatpush1.bf16.msra.mxu0 0
        %588 = vmatprep.subr.bf16.mxu0 0
        %589 = vmatpush1.bf16.msra.mxu0 0
        %590 = vmatprep.subr.bf16.mxu0 0
        %591 = vmatpush1.bf16.msra.mxu0 0
        %592 = vmatprep.subr.bf16.mxu0 0
        %593 = vmatpush1.bf16.msra.mxu0 0
        %594 = vmatprep.subr.bf16.mxu0 0
        %595 = vmatpush1.bf16.msra.mxu0 0
        %596 = vmatprep.subr.bf16.mxu0 0
        %597 = vmatpush1.bf16.msra.mxu0 0
        %598 = vmatprep.subr.bf16.mxu0 0
        %599 = vmatpush1.bf16.msra.mxu0 0
        %600 = vmatprep.subr.bf16.mxu0 0
        %601 = vmatpush1.bf16.msra.mxu0 0
        %602 = vmatprep.subr.bf16.mxu0 0
        %603 = vmatpush1.bf16.msra.mxu0 0
        %604 = vmatprep.subr.bf16.mxu0 0
        %605 = vmatpush1.bf16.msra.mxu0 0
        %606 = vmatprep.subr.bf16.mxu0 0
        %607 = vmatpush1.bf16.msra.mxu0 0
        %608 = vmatprep.mubr.f32.mxu0 0.0
        %609 = vmatmul.mubr.f32.gmra.mrb[0].mxu0 %v568
        %v610 = vpop.f32.mrb[0].mxu0
        %v611 = vadd.f32 0.0, %v610
        %v612 = vpop.f32.mrb[0].mxu0
        %613 = vmatprep.mubr.f32.mxu0 0.0
        %614 = vmatmul.mubr.f32.gmra.mrb[0].mxu0 %v571
        %v615 = vpop.f32.mrb[0].mxu0
        %v616 = vadd.f32 0.0, %v615
        %v617 = vpop.f32.mrb[0].mxu0
        %618 = vdwg.mxu0
        %v619 = vadd.f32 %v553, %v611
        %v620 = vadd.f32 %v558, %v616
        %v621 = vld [vmem:[%s4] sm:$0x1]
        %v623 = vlaneseq
        %v624 = vshrl.u32 %v623, 7
        %v625 = vsub.s32 0, %v624
        %v626 = vrot.slane %v621, %v625
        %v628 = vadd.f32 %v619, %v626
        %v629 = vadd.f32 %v620, %v626
        %v630 = vmax.f32 %v628, 0.0
        %v631 = vmax.f32 %v629, 0.0
        %v632 = vlaneseq
        %v633 = vshrl.u32 %v632, 7
        %v634 = vadd.s32 %v633, 8
        %s635 = smul.u32 %s26, 8
        %v636 = vstv %s635
        %v637 = vadd.s32 %v636, %v633
        %v638 = vadd.s32 %v636, %v634
        %v639 = vsub.s32 %v637, 1
        %v640 = vsub.s32 %v638, 1
        %vm641 = vcmp.ge.s32.totalorder %v639, 0
        %vm642 = vcmp.ge.s32.totalorder %v640, 0
        %vm643 = vcmp.lt.s32.totalorder %v639, 8
        %vm644 = vcmp.lt.s32.totalorder %v640, 8
        %vm645 = vmand %vm641, %vm643
        %vm646 = vmand %vm642, %vm644
        %v647 = vsel %vm645, %v630, 0.0
        %v648 = vsel %vm646, %v631, 0.0
        %v649 = vpack.c.bf16 %v647, %v647
        %v650 = vld [vmem:[%s5] sm:$0xf]
        %v651 = vpack.c.bf16 %v648, %v647
        %s652 = scalar_lea.vmem %s5, 4
        %v653 = vld [vmem:[%s652] sm:$0xf]
        %v655 = vshrl.u32 %v651, 16
        %v657 = vshll.u32 %v651, 16
        %v659 = vrot.slane %v657, 1
        %v660 = vor.u32 %v655, %v659
        %vm661 = vcmask 64512
        %v663 = vsel %vm661, %v660, 0
        %vm665 = vcmask 1043456
        %v667 = vsel %vm665, %v653, 0
        %669 = vmatprep.subr.bf16.mxu0 0
        %670 = vmatpush1.bf16.msra.mxu0 %v667
        %671 = vmatprep.subr.bf16.mxu0 0
        %672 = vmatpush1.bf16.msra.mxu0 0
        %673 = vmatprep.subr.bf16.mxu0 0
        %674 = vmatpush1.bf16.msra.mxu0 0
        %675 = vmatprep.subr.bf16.mxu0 0
        %676 = vmatpush1.bf16.msra.mxu0 0
        %677 = vmatprep.subr.bf16.mxu0 0
        %678 = vmatpush1.bf16.msra.mxu0 0
        %679 = vmatprep.subr.bf16.mxu0 0
        %680 = vmatpush1.bf16.msra.mxu0 0
        %681 = vmatprep.subr.bf16.mxu0 0
        %682 = vmatpush1.bf16.msra.mxu0 0
        %683 = vmatprep.subr.bf16.mxu0 0
        %684 = vmatpush1.bf16.msra.mxu0 0
        %685 = vmatprep.subr.bf16.mxu0 0
        %686 = vmatpush1.bf16.msra.mxu0 0
        %687 = vmatprep.subr.bf16.mxu0 0
        %688 = vmatpush1.bf16.msra.mxu0 0
        %689 = vmatprep.subr.bf16.mxu0 0
        %690 = vmatpush1.bf16.msra.mxu0 0
        %691 = vmatprep.subr.bf16.mxu0 0
        %692 = vmatpush1.bf16.msra.mxu0 0
        %693 = vmatprep.subr.bf16.mxu0 0
        %694 = vmatpush1.bf16.msra.mxu0 0
        %695 = vmatprep.subr.bf16.mxu0 0
        %696 = vmatpush1.bf16.msra.mxu0 0
        %697 = vmatprep.subr.bf16.mxu0 0
        %698 = vmatpush1.bf16.msra.mxu0 0
        %699 = vmatprep.subr.bf16.mxu0 0
        %700 = vmatpush1.bf16.msra.mxu0 0
        %701 = vmatprep.mubr.bf16.mxu0 0
        %702 = vmatmul.mubr.bf16.gmra.mrb[0].mxu0 %v663
        %v703 = vpop.f32.mrb[0].mxu0
        %v704 = vadd.f32 0.0, %v703
        %v705 = vpop.f32.mrb[0].mxu0
        %v706 = vpop.f32.mrb[0].mxu0
        %v707 = vpop.f32.mrb[0].mxu0
        %708 = vdwg.mxu0
        %v710 = vsel %vm661, %v649, 0
        %v713 = vsel %vm665, %v650, 0
        %715 = vmatprep.subr.bf16.mxu0 0
        %716 = vmatpush1.bf16.msra.mxu0 %v713
        %717 = vmatprep.subr.bf16.mxu0 0
        %718 = vmatpush1.bf16.msra.mxu0 0
        %719 = vmatprep.subr.bf16.mxu0 0
        %720 = vmatpush1.bf16.msra.mxu0 0
        %721 = vmatprep.subr.bf16.mxu0 0
        %722 = vmatpush1.bf16.msra.mxu0 0
        %723 = vmatprep.subr.bf16.mxu0 0
        %724 = vmatpush1.bf16.msra.mxu0 0
        %725 = vmatprep.subr.bf16.mxu0 0
        %726 = vmatpush1.bf16.msra.mxu0 0
        %727 = vmatprep.subr.bf16.mxu0 0
        %728 = vmatpush1.bf16.msra.mxu0 0
        %729 = vmatprep.subr.bf16.mxu0 0
        %730 = vmatpush1.bf16.msra.mxu0 0
        %731 = vmatprep.subr.bf16.mxu0 0
        %732 = vmatpush1.bf16.msra.mxu0 0
        %733 = vmatprep.subr.bf16.mxu0 0
        %734 = vmatpush1.bf16.msra.mxu0 0
        %735 = vmatprep.subr.bf16.mxu0 0
        %736 = vmatpush1.bf16.msra.mxu0 0
        %737 = vmatprep.subr.bf16.mxu0 0
        %738 = vmatpush1.bf16.msra.mxu0 0
        %739 = vmatprep.subr.bf16.mxu0 0
        %740 = vmatpush1.bf16.msra.mxu0 0
        %741 = vmatprep.subr.bf16.mxu0 0
        %742 = vmatpush1.bf16.msra.mxu0 0
        %743 = vmatprep.subr.bf16.mxu0 0
        %744 = vmatpush1.bf16.msra.mxu0 0
        %745 = vmatprep.subr.bf16.mxu0 0
        %746 = vmatpush1.bf16.msra.mxu0 0
        %747 = vmatprep.mubr.bf16.mxu0 0
        %748 = vmatmul.mubr.bf16.gmra.mrb[0].mxu0 %v710
        %v749 = vpop.f32.mrb[0].mxu0
        %v750 = vadd.f32 %v704, %v749
        %v751 = vpop.f32.mrb[0].mxu0
        %v752 = vpop.f32.mrb[0].mxu0
        %v753 = vpop.f32.mrb[0].mxu0
        %754 = vdwg.mxu0
        %s755 = scalar_lea.vmem %s5, 8
        %v756 = vld [vmem:[%s755] sm:$0xf]
        %v758 = vrot.slane %v651, 1
        %v760 = vsel %vm661, %v758, 0
        %v763 = vsel %vm665, %v756, 0
        %765 = vmatprep.subr.bf16.mxu0 0
        %766 = vmatpush1.bf16.msra.mxu0 %v763
        %767 = vmatprep.subr.bf16.mxu0 0
        %768 = vmatpush1.bf16.msra.mxu0 0
        %769 = vmatprep.subr.bf16.mxu0 0
        %770 = vmatpush1.bf16.msra.mxu0 0
        %771 = vmatprep.subr.bf16.mxu0 0
        %772 = vmatpush1.bf16.msra.mxu0 0
        %773 = vmatprep.subr.bf16.mxu0 0
        %774 = vmatpush1.bf16.msra.mxu0 0
        %775 = vmatprep.subr.bf16.mxu0 0
        %776 = vmatpush1.bf16.msra.mxu0 0
        %777 = vmatprep.subr.bf16.mxu0 0
        %778 = vmatpush1.bf16.msra.mxu0 0
        %779 = vmatprep.subr.bf16.mxu0 0
        %780 = vmatpush1.bf16.msra.mxu0 0
        %781 = vmatprep.subr.bf16.mxu0 0
        %782 = vmatpush1.bf16.msra.mxu0 0
        %783 = vmatprep.subr.bf16.mxu0 0
        %784 = vmatpush1.bf16.msra.mxu0 0
        %785 = vmatprep.subr.bf16.mxu0 0
        %786 = vmatpush1.bf16.msra.mxu0 0
        %787 = vmatprep.subr.bf16.mxu0 0
        %788 = vmatpush1.bf16.msra.mxu0 0
        %789 = vmatprep.subr.bf16.mxu0 0
        %790 = vmatpush1.bf16.msra.mxu0 0
        %791 = vmatprep.subr.bf16.mxu0 0
        %792 = vmatpush1.bf16.msra.mxu0 0
        %793 = vmatprep.subr.bf16.mxu0 0
        %794 = vmatpush1.bf16.msra.mxu0 0
        %795 = vmatprep.subr.bf16.mxu0 0
        %796 = vmatpush1.bf16.msra.mxu0 0
        %797 = vmatprep.mubr.bf16.mxu0 0
        %798 = vmatmul.mubr.bf16.gmra.mrb[0].mxu0 %v760
        %v799 = vpop.f32.mrb[0].mxu0
        %v800 = vadd.f32 0.0, %v799
        %v801 = vpop.f32.mrb[0].mxu0
        %v802 = vpop.f32.mrb[0].mxu0
        %v803 = vpop.f32.mrb[0].mxu0
        %804 = vdwg.mxu0
        %v805 = vadd.f32 %v750, %v800
        %vm808 = vcmask 1046528
        %v809 = vrot.slane %v619, 1
        %v810 = vrot.slane %v620, 1
        %v811 = vsel %vm808, %v809, %v810
        %812 = vrot.lane.b32.xlu0 %v811, 120
        %v813 = vpop.permute.xlu0 %812
        %v815 = vadd.f32 %v805, %v813
        %v816 = vld [vmem:[%s6] sm:$0x1]
        %v818 = vlaneseq
        %v819 = vshrl.u32 %v818, 7
        %v820 = vsub.s32 0, %v819
        %v821 = vrot.slane %v816, %v820
        %v823 = vadd.f32 %v815, %v821
        %v824 = vmax.f32 %v823, 0.0
        %825 = vxpose.xlu0.b32.start [1/16] %v824, 128
        %826 = vxpose.xlu0.b32.cont [2/16] 0.0, 128
        %827 = vxpose.xlu0.b32.cont [3/16] 0.0, 128
        %828 = vxpose.xlu0.b32.cont [4/16] 0.0, 128
        %829 = vxpose.xlu0.b32.cont [5/16] 0.0, 128
        %830 = vxpose.xlu0.b32.cont [6/16] 0.0, 128
        %831 = vxpose.xlu0.b32.cont [7/16] 0.0, 128
        %832 = vxpose.xlu0.b32.cont [8/16] 0.0, 128
        %833 = vxpose.xlu0.b32.cont [9/16] 0.0, 128
        %834 = vxpose.xlu0.b32.cont [10/16] 0.0, 128
        %835 = vxpose.xlu0.b32.cont [11/16] 0.0, 128
        %836 = vxpose.xlu0.b32.cont [12/16] 0.0, 128
        %837 = vxpose.xlu0.b32.cont [13/16] 0.0, 128
        %838 = vxpose.xlu0.b32.cont [14/16] 0.0, 128
        %839 = vxpose.xlu0.b32.cont [15/16] 0.0, 128
        %840 = vxpose.xlu0.b32.end [16/16] 0.0, 128
        %v841 = vpop.trf.xlu0
        %v842 = vpop.trf.xlu0
        %v843 = vpop.trf.xlu0
        %v844 = vpop.trf.xlu0
        %v845 = vpop.trf.xlu0
        %v846 = vpop.trf.xlu0
        %v847 = vpop.trf.xlu0
        %v848 = vpop.trf.xlu0
        %v849 = vpop.trf.xlu0
        %v850 = vpop.trf.xlu0
        %v851 = vpop.trf.xlu0
        %v852 = vpop.trf.xlu0
        %v853 = vpop.trf.xlu0
        %v854 = vpop.trf.xlu0
        %v855 = vpop.trf.xlu0
        %v856 = vpop.trf.xlu0
        %857 = vst.msk [vmem:[%s384] sm:$0xff] %vm661, %v841
        %s858 = sand.u32 %s223, 1
        %s859 = scalar_lea.sflag [#allocation4], %s858
        %s860 = sand.u32 %s223, 1
        %s861 = smul.addr %s860, 8
        %s862 = scalar_lea.vmem [#allocation3], %s861
        // Predicated region
        $region49: #{resnet1d_down_block.1} parent=47 // pred_check
          %p863 = pneg %p233
        $region50: #{resnet1d_down_block.1} parent=47 // pred_check_branch
          %865 = sbr.rel (%p863) target = $region52
        $region51: #{resnet1d_down_block.1} parent=47 // pred_region
          %s867 = ssub.s32 128, 128
          %868 = vsyncadd %s859, %s867
          %s869 = sadd.s32 %s26, %s25
          %s870 = smul.addr %s869, 128
          %s871 = scalar_lea.hbm %s7, %s870
          %s873 = sshll.u32 %s862, 4
          %s874 = int_to_ptr.vmem [resolvable:$true] %s873
          %876 = dma.vmem_to_hbm [thread:$0]  %s874, 128, %s871, %s859
        $region52: #{resnet1d_down_block.1} parent=47 // pred_fallthru
          _
      $region48: #{resnet1d_down_block.1} parent=5 // pred_fallthru
        _
      %p877 = scmp.le.s32.totalorder 2, %s16
      // Predicated region
      $region53: #{resnet1d_down_block.1} parent=5 // pred_check
        %p878 = pneg %p877
      $region54: #{resnet1d_down_block.1} parent=5 // pred_check_branch
        %880 = sbr.rel (%p878) target = $region56
      $region55: #{resnet1d_down_block.1} parent=5 // pred_region
        %s881 = ssub.s32 %s16, 2
        // Predicated region
        $region57: #{resnet1d_down_block.1} parent=55 // pred_check
          %p882 = pneg %p239
        $region58: #{resnet1d_down_block.1} parent=55 // pred_check_branch
          %884 = sbr.rel (%p882) target = $region60
        $region59: #{resnet1d_down_block.1} parent=55 // pred_region
          %s885 = sand.u32 %s224, 1
          %s886 = scalar_lea.sflag [#allocation4], %s885
          %s887 = sand.u32 %s224, 1
          %s888 = smul.addr %s887, 8
          %s889 = scalar_lea.vmem [#allocation3], %s888
          %890 = dma.done %s886, 128
        $region60: #{resnet1d_down_block.1} parent=55 // pred_fallthru
          _
      $region56: #{resnet1d_down_block.1} parent=5 // pred_fallthru
        _
    $region6: #{resnet1d_down_block.1} parent=1 // loop_footer
      %s20 = sadd.s32 1, %s16
    $region7: #{resnet1d_down_block.1} parent=1 // loop_footer_branch
      %15 = sbr.rel target = $region3
    $region8: #{resnet1d_down_block.1} parent=1 // loop_exit
      _
    %891 = vsyncpa [#allocation4], 1
    %s892 = scalar_lea.sflag [#allocation4], 1
    %893 = vsyncpa %s892, 1

</llo_original>
